<compile_context>
chip_gen: v5e
topology: v5e:2x2
jax: 0.10.0
libtpu: 0.0.40
codegen_flags: <defaults>
</compile_context>

<pallas_src>
import math
import functools

import jax
import jax.numpy as jnp
from jax import lax
from jax.experimental import pallas as pl
from jax.experimental.pallas import tpu as pltpu


_MASK_VALUE = -1e30  # large-negative (not -inf) mask for padded keys


# ---------------------------------------------------------------------------
# tiling helpers
# ---------------------------------------------------------------------------
def _round_up(x, m):
    return ((x + m - 1) // m) * m


def _seq_tile(dim, target):
    """(tile, padded_dim) for a sequence axis.

    Never shrinks to tiny divisors: awkward lengths are padded up to the tile
    (padded keys get masked, padded query rows are sliced off afterwards).
    """
    target = max(8, (target // 8) * 8)
    if dim <= target:
        t = _round_up(dim, 8)
        return t, t
    return target, _round_up(dim, target)


def _row_tile(m, target):
    """Largest row tile <= target dividing m (m is a multiple of 8 here)."""
    if m <= target:
        return m
    t = (target // 8) * 8
    while t >= 8:
        if m % t == 0:
            return t
        t -= 8
    return m


def _contract_tile(dm, target):
    """Tile for the d_model contraction axis of the projection matmul."""
    if dm <= target:
        return dm
    t = (target // 128) * 128
    while t >= 128:
        if dm % t == 0:
            return t
        t -= 128
    return dm  # awkward d_model: keep a single (full) K step


# ---------------------------------------------------------------------------
# Stage 1: fused multi-output projection  (M, Dm) @ (Dm, Dkp) x n_out
# Grid = (M/tm, Dm/tdm); reduction axis last, f32 accumulators; every weight
# shares the single HBM read of the x block.
# ---------------------------------------------------------------------------
def _make_proj_kernel(n_out):
    def kernel(*args):
        x_ref = args[0]
        w_refs = args[1:1 + n_out]
        o_refs = args[1 + n_out:1 + 2 * n_out]
        acc_refs = args[1 + 2 * n_out:]
        kk = pl.program_id(1)

        @pl.when(kk == 0)
        def _():
            for acc in acc_refs:
                acc[...] = jnp.zeros_like(acc)

        x = x_ref[...]
        for w_ref, acc in zip(w_refs, acc_refs):
            acc[...] += jnp.dot(x, w_ref[...], preferred_element_type=jnp.float32)

        @pl.when(kk == pl.num_programs(1) - 1)
        def _():
            for o_ref, acc in zip(o_refs, acc_refs):
                o_ref[...] = acc[...].astype(o_ref.dtype)

    return kernel


def _project(x2d, weights, *, block_m=512, block_dm=1024):
    """x2d: (M, Dm); weights: list of (Dm, Dkp) (pre-transposed, pre-scaled)."""
    m, dm = x2d.shape
    n_out = len(weights)
    dkp = weights[0].shape[1]
    tm = _row_tile(m, block_m)
    tdm = _contract_tile(dm, block_dm)

    out_shape = tuple(jax.ShapeDtypeStruct((m, dkp), x2d.dtype) for _ in range(n_out))
    in_specs = [pl.BlockSpec((tm, tdm), lambda i, kk: (i, kk))]
    in_specs += [pl.BlockSpec((tdm, dkp), lambda i, kk: (kk, 0)) for _ in range(n_out)]
    out_specs = tuple(pl.BlockSpec((tm, dkp), lambda i, kk: (i, 0)) for _ in range(n_out))
    scratch = [pltpu.VMEM((tm, dkp), jnp.float32) for _ in range(n_out)]

    outs = pl.pallas_call(
        _make_proj_kernel(n_out),
        out_shape=out_shape,
        grid_spec=pltpu.PrefetchScalarGridSpec(
            num_scalar_prefetch=0,
            grid=(m // tm, dm // tdm),
            in_specs=in_specs,
            out_specs=out_specs,
            scratch_shapes=scratch,
        ),
        compiler_params=pltpu.CompilerParams(
            dimension_semantics=("parallel", "arbitrary"),
        ),
    )(x2d, *weights)
    if not isinstance(outs, (list, tuple)):
        outs = (outs,)
    return list(outs)


# ---------------------------------------------------------------------------
# Stage 2: flash attention with fused Q projection and online softmax
# ---------------------------------------------------------------------------
def _flash_kernel(q_raw_ref, wq_ref, k_ref, v_ref, o_ref,
                  q_scr, m_scr, l_scr, acc_scr,
                  *, tk, sk_valid, kv_resident, approx_recip):
    ki = pl.program_id(2)

    @pl.when(ki == 0)
    def _():
        m_scr[...] = jnp.full_like(m_scr, -jnp.inf)
        l_scr[...] = jnp.zeros_like(l_scr)
        acc_scr[...] = jnp.zeros_like(acc_scr)
        # Fused query projection: the q tile is consumed exactly once, so
        # projecting it here (scale folded into Wq on the host) avoids the
        # HBM write + re-read of q between stages.
        q_scr[...] = jnp.dot(
            q_raw_ref[0], wq_ref[...], preferred_element_type=jnp.float32
        ).astype(q_scr.dtype)

    if kv_resident:
        start = ki * tk
        if tk % 8 == 0:
            start = pl.multiple_of(start, 8)
        k = k_ref[0, pl.ds(start, tk), :]
        v = v_ref[0, pl.ds(start, tk), :]
    else:
        k = k_ref[0]
        v = v_ref[0]

    # scores = q @ k^T without materializing a transpose (contract on dim 1).
    s = lax.dot_general(
        q_scr[...], k, (((1,), (1,)), ((), ())), preferred_element_type=jnp.float32
    )  # (tq, tk) f32

    if sk_valid is not None:  # static: only when the key axis was padded
        col = ki * tk + lax.broadcasted_iota(jnp.int32, s.shape, 1)
        s = jnp.where(col < sk_valid, s, _MASK_VALUE)

    m_prev = m_scr[...]                                   # (tq, 1)
    m_new = jnp.maximum(m_prev, jnp.max(s, axis=-1, keepdims=True))
    alpha = jnp.exp(m_prev - m_new)
    p = jnp.exp(s - m_new)

    l_scr[...] = alpha * l_scr[...] + jnp.sum(p, axis=-1, keepdims=True)
    acc_scr[...] = alpha * acc_scr[...] + jnp.dot(
        p.astype(v.dtype), v, preferred_element_type=jnp.float32
    )
    m_scr[...] = m_new

    @pl.when(ki == pl.num_programs(2) - 1)
    def _():
        if approx_recip:
            inv_l = pl.reciprocal(l_scr[...], approx=True)   # EUP slot, ~free
            o_ref[0] = (acc_scr[...] * inv_l).astype(o_ref.dtype)
        else:
            o_ref[0] = (acc_scr[...] / l_scr[...]).astype(o_ref.dtype)


def _streaming_kv_spec(tk, dkp, depth=3):
    index_map = lambda b, qi, ki: (b, ki, 0)
    try:
        # Third buffer hides the DMA bubble when the K block index jumps back
        # to 0 at qi boundaries; costs one extra (1,tk,dkp) tile of VMEM.
        return pl.BlockSpec((1, tk, dkp), index_map,
                            pipeline_mode=pl.Buffered(depth))
    except (TypeError, AttributeError):
        return pl.BlockSpec((1, tk, dkp), index_map)


def _flash_attention(q_raw, wq_t, k, v, *, tq, tk, sk_valid, out_dtype,
                     approx_recip, kv_resident_limit_bytes):
    B, sq_pad, dm = q_raw.shape
    _, sk_pad, dkp = k.shape

    # Resident K/V: DMA once per batch instead of once per q tile.  Guarded by
    # a footprint check (K+V, double-buffered) so v5e's 16 MiB / v7x's 32 MiB
    # scoped defaults are respected; otherwise stream tk chunks.
    kv_bytes = 2 * 2 * sk_pad * dkp * k.dtype.itemsize
    kv_resident = kv_bytes <= kv_resident_limit_bytes

    q_spec = pl.BlockSpec((1, tq, dm), lambda b, qi, ki: (b, qi, 0))
    wq_spec = pl.BlockSpec((dm, dkp), lambda b, qi, ki: (0, 0))
    if kv_resident:
        k_spec = pl.BlockSpec((1, sk_pad, dkp), lambda b, qi, ki: (b, 0, 0))
        v_spec = pl.BlockSpec((1, sk_pad, dkp), lambda b, qi, ki: (b, 0, 0))
    else:
        k_spec = _streaming_kv_spec(tk, dkp)
        v_spec = _streaming_kv_spec(tk, dkp)

    kernel = functools.partial(
        _flash_kernel, tk=tk, sk_valid=sk_valid,
        kv_resident=kv_resident, approx_recip=approx_recip)

    return pl.pallas_call(
        kernel,
        out_shape=jax.ShapeDtypeStruct((B, sq_pad, dkp), out_dtype),
        grid_spec=pltpu.PrefetchScalarGridSpec(
            num_scalar_prefetch=0,
            grid=(B, sq_pad // tq, sk_pad // tk),
            in_specs=[q_spec, wq_spec, k_spec, v_spec],
            out_specs=pl.BlockSpec((1, tq, dkp), lambda b, qi, ki: (b, qi, 0)),
            scratch_shapes=[
                pltpu.VMEM((tq, dkp), q_raw.dtype),   # projected q tile
                pltpu.VMEM((tq, 1), jnp.float32),     # running max  m
                pltpu.VMEM((tq, 1), jnp.float32),     # running sum  l
                pltpu.VMEM((tq, dkp), jnp.float32),   # output accumulator
            ],
        ),
        compiler_params=pltpu.CompilerParams(
            dimension_semantics=("parallel", "parallel", "arbitrary"),
        ),
    )(q_raw, wq_t, k, v)


# ---------------------------------------------------------------------------
# Public wrapper (matches the PyTorch module's forward semantics)
# ---------------------------------------------------------------------------
def scaled_dot_product_attention(
    query, key, value, w_q, w_k, w_v, *,
    block_q=512, block_k=256, block_m=512, block_dm=1024,
    compute_dtype=jnp.bfloat16,
    kv_resident_limit_bytes=8 * 1024 * 1024,
    shared_kv=None,
):
    """query/key/value: (B, S, d_model); w_*: (d_k, d_model). Returns (B, Sq, d_k)."""
    B, Sq, Dm = query.shape
    _, Sk, _ = key.shape
    Dk = w_q.shape[0]

    # Head-dim lane padding only when d_k > 128 and unaligned; small d_k keeps
    # full-dim blocks (padding a 16-wide head to 128 lanes would multiply all
    # Q/K/V traffic by 8x for zero benefit).
    Dkp = _round_up(Dk, 128) if (Dk > 128 and Dk % 128 != 0) else Dk

    scale = 1.0 / math.sqrt(Dk)

    def prep_w(w, s=1.0):
        wt = (w.T.astype(jnp.float32) * s).astype(compute_dtype)  # (Dm, Dk)
        if Dkp != Dk:
            wt = jnp.pad(wt, ((0, 0), (0, Dkp - Dk)))
        return wt

    wq_t = prep_w(w_q, scale)   # fold 1/sqrt(d_k) into the query projection
    wk_t = prep_w(w_k)
    wv_t = prep_w(w_v)

    tq, Sq_pad = _seq_tile(Sq, block_q)
    tk, Sk_pad = _seq_tile(Sk, block_k)

    def pad_seq(x, s_pad):
        s = x.shape[1]
        return x if s_pad == s else jnp.pad(x, ((0, 0), (0, s_pad - s), (0, 0)))

    q_raw = pad_seq(query.astype(compute_dtype), Sq_pad)
    key_c = pad_seq(key.astype(compute_dtype), Sk_pad)

    if shared_kv is None:
        shared_kv = key is value   # heuristic; pass shared_kv=True under jit

    if shared_kv:
        # Self-/shared-source attention: K and V projections share one
        # pallas_call -> x is read from HBM once instead of twice.
        k2, v2 = _project(key_c.reshape(B * Sk_pad, Dm), [wk_t, wv_t],
                          block_m=block_m, block_dm=block_dm)
    else:
        value_c = pad_seq(value.astype(compute_dtype), Sk_pad)
        (k2,) = _project(key_c.reshape(B * Sk_pad, Dm), [wk_t],
                         block_m=block_m, block_dm=block_dm)
        (v2,) = _project(value_c.reshape(B * Sk_pad, Dm), [wv_t],
                         block_m=block_m, block_dm=block_dm)
    k = k2.reshape(B, Sk_pad, Dkp)
    v = v2.reshape(B, Sk_pad, Dkp)

    out = _flash_attention(
        q_raw, wq_t, k, v, tq=tq, tk=tk,
        sk_valid=None if Sk_pad == Sk else Sk,
        out_dtype=query.dtype,
        approx_recip=(jnp.dtype(compute_dtype) != jnp.dtype(jnp.float32)),
        kv_resident_limit_bytes=kv_resident_limit_bytes,
    )

    if Sq_pad != Sq:
        out = out[:, :Sq, :]
    if Dkp != Dk:
        out = out[..., :Dk]
    return out


# ---------------------------------------------------------------------------
# Reference (pure JAX, f32) and tests
# ---------------------------------------------------------------------------
def _reference(query, key, value, w_q, w_k, w_v, d_k):
    q = query @ w_q.T
    k = key @ w_k.T
    v = value @ w_v.T
    s = jnp.einsum("bqd,bkd->bqk", q, k) / math.sqrt(d_k)
    att = jax.nn.softmax(s, axis=-1)
    return jnp.einsum("bqk,bkd->bqd", att, v)


if __name__ == "__main__":
    B, S, d_model, d_k = 2, 8, 32, 16

    key0 = jax.random.PRNGKey(0)
    k_q, k_k, k_v, k_wq, k_wk, k_wv = jax.random.split(key0, 6)

    query = jax.random.normal(k_q, (B, S, d_model), dtype=jnp.float32)
    key_t = jax.random.normal(k_k, (B, S, d_model), dtype=jnp.float32)
    value = jax.random.normal(k_v, (B, S, d_model), dtype=jnp.float32)

    # nn.Linear(d_model, d_k, bias=False) weights: shape (d_k, d_model).
    bound = 1.0 / math.sqrt(d_model)
    w_q = jax.random.uniform(k_wq, (d_k, d_model), jnp.float32, -bound, bound)
    w_k = jax.random.uniform(k_wk, (d_k, d_model), jnp.float32, -bound, bound)
    w_v = jax.random.uniform(k_wv, (d_k, d_model), jnp.float32, -bound, bound)

    # 1) General (distinct q/k/v sources), f32 compute path -> tight check.
    ref = _reference(query, key_t, value, w_q, w_k, w_v, d_k)
    out_f32 = scaled_dot_product_attention(
        query, key_t, value, w_q, w_k, w_v, compute_dtype=jnp.float32)
    out_f32 = jax.block_until_ready(out_f32)
    assert out_f32.shape == (B, S, d_k)
    assert jnp.allclose(out_f32, ref, atol=2e-3, rtol=2e-3)

    # 2) Same inputs, default bf16 operands -> loose check.
    out_bf16 = scaled_dot_product_attention(query, key_t, value, w_q, w_k, w_v)
    out_bf16 = jax.block_until_ready(out_bf16)
    assert out_bf16.shape == (B, S, d_k)
    assert jnp.allclose(out_bf16, ref, atol=5e-2, rtol=5e-2)

    # 3) Self-attention (same array -> fused K/V projection pallas_call).
    ref_self = _reference(query, query, query, w_q, w_k, w_v, d_k)
    out_self = scaled_dot_product_attention(query, query, query, w_q, w_k, w_v)
    out_self = jax.block_until_ready(out_self)
    assert jnp.allclose(out_self, ref_self, atol=5e-2, rtol=5e-2)

    # 4) Unaligned sequence lengths -> padded keys masked, padded q rows sliced.
    Sq2, Sk2 = 12, 20
    q2 = jax.random.normal(k_q, (B, Sq2, d_model), dtype=jnp.float32)
    k2 = jax.random.normal(k_k, (B, Sk2, d_model), dtype=jnp.float32)
    v2 = jax.random.normal(k_v, (B, Sk2, d_model), dtype=jnp.float32)
    ref2 = _reference(q2, k2, v2, w_q, w_k, w_v, d_k)
    out2 = scaled_dot_product_attention(
        q2, k2, v2, w_q, w_k, w_v, compute_dtype=jnp.float32)
    out2 = jax.block_until_ready(out2)
    assert out2.shape == (B, Sq2, d_k)
    assert jnp.allclose(out2, ref2, atol=2e-3, rtol=2e-3)

    print("KERNEL_OK")
</pallas_src>

<mosaic_0001>
module attributes {stable_mosaic.version = 11 : i64} {
  func.func @kernel(%arg0: i32, %arg1: i32, %arg2: memref<16x32xf32, #tpu.memory_space<vmem>>, %arg3: memref<32x16xf32, #tpu.memory_space<vmem>>, %arg4: memref<16x16xf32, #tpu.memory_space<vmem>>, %arg5: memref<16x16xf32, #tpu.memory_space<vmem>>) attributes {dimension_semantics = [#tpu.dimension_semantics<parallel>, #tpu.dimension_semantics<arbitrary>], iteration_bounds = array<i64: 1, 1>, scalar_prefetch = 0 : i64, scratch_operands = 1 : i64, tpu.core_type = #tpu.core_type<tc>, window_params = [{transform_indices = @transform_0, window_bounds = array<i64: 16, 32>}, {transform_indices = @transform_1, window_bounds = array<i64: 32, 16>}, {transform_indices = @transform_2, window_bounds = array<i64: 16, 16>}]} {
    %c0_i32 = arith.constant 0 : i32
    %0 = arith.cmpi eq, %arg1, %c0_i32 : i32
    %1 = arith.extui %0 : i1 to i32
    %c0_i32_0 = arith.constant 0 : i32
    %2 = arith.cmpi ne, %1, %c0_i32_0 : i32
    scf.if %2 {
      %cst_10 = arith.constant 0.000000e+00 : f32
      %12 = vector.broadcast %cst_10 : f32 to vector<16x16xf32>
      %c0_11 = arith.constant 0 : index
      %c0_12 = arith.constant 0 : index
      %13 = vector.load %arg5[%c0_11, %c0_12] : memref<16x16xf32, #tpu.memory_space<vmem>>, vector<16x16xf32>
      tpu.vector_store %arg5[%c0_11, %c0_12], %12 {strides = array<i32>} : memref<16x16xf32, #tpu.memory_space<vmem>>, vector<16x16xf32>,
    } else {
    }
    %c0 = arith.constant 0 : index
    %c0_1 = arith.constant 0 : index
    %3 = vector.load %arg2[%c0, %c0_1] : memref<16x32xf32, #tpu.memory_space<vmem>>, vector<16x32xf32>
    %c0_2 = arith.constant 0 : index
    %c0_3 = arith.constant 0 : index
    %4 = vector.load %arg5[%c0_2, %c0_3] : memref<16x16xf32, #tpu.memory_space<vmem>>, vector<16x16xf32>
    %c0_4 = arith.constant 0 : index
    %c0_5 = arith.constant 0 : index
    %5 = vector.load %arg3[%c0_4, %c0_5] : memref<32x16xf32, #tpu.memory_space<vmem>>, vector<32x16xf32>
    %cst = arith.constant dense<0.000000e+00> : vector<16x16xf32>
    %6 = tpu.matmul %3, %5, %cst {dimension_numbers = #tpu.dot_dimension_numbers<[1], [0], [0], [1], [0, 0, 1, 1], [], []>} : vector<16x32xf32>, vector<32x16xf32>, vector<16x16xf32> -> vector<16x16xf32>
    %7 = arith.addf %4, %6 : vector<16x16xf32>
    %c0_6 = arith.constant 0 : index
    %c0_7 = arith.constant 0 : index
    %8 = vector.load %arg5[%c0_6, %c0_7] : memref<16x16xf32, #tpu.memory_space<vmem>>, vector<16x16xf32>
    tpu.vector_store %arg5[%c0_6, %c0_7], %7 {strides = array<i32>} : memref<16x16xf32, #tpu.memory_space<vmem>>, vector<16x16xf32>,
    %c0_i32_8 = arith.constant 0 : i32
    %9 = arith.cmpi eq, %arg1, %c0_i32_8 : i32
    %10 = arith.extui %9 : i1 to i32
    %c0_i32_9 = arith.constant 0 : i32
    %11 = arith.cmpi ne, %10, %c0_i32_9 : i32
    scf.if %11 {
      %c0_10 = arith.constant 0 : index
      %c0_11 = arith.constant 0 : index
      %12 = vector.load %arg5[%c0_10, %c0_11] : memref<16x16xf32, #tpu.memory_space<vmem>>, vector<16x16xf32>
      %c0_12 = arith.constant 0 : index
      %c0_13 = arith.constant 0 : index
      %13 = vector.load %arg4[%c0_12, %c0_13] : memref<16x16xf32, #tpu.memory_space<vmem>>, vector<16x16xf32>
      tpu.vector_store %arg4[%c0_12, %c0_13], %12 {strides = array<i32>} : memref<16x16xf32, #tpu.memory_space<vmem>>, vector<16x16xf32>,
    } else {
    }
    return
  }
  func.func @transform_0(%arg0: i32, %arg1: i32) -> (i32, i32) {
    %c0_i32 = arith.constant 0 : i32
    return %arg0, %arg1 : i32, i32
  }
  func.func @transform_1(%arg0: i32, %arg1: i32) -> (i32, i32) {
    %c0_i32 = arith.constant 0 : i32
    %c0_i32_0 = arith.constant 0 : i32
    return %arg1, %c0_i32 : i32, i32
  }
  func.func @transform_2(%arg0: i32, %arg1: i32) -> (i32, i32) {
    %c0_i32 = arith.constant 0 : i32
    %c0_i32_0 = arith.constant 0 : i32
    return %arg0, %c0_i32 : i32, i32
  }
}

</mosaic_0001>

<llo_original>
// kernel: tpu_custom_call.1
$region0: #{tpu_custom_call.1}
  #allocation0 [shape = 'u32[]', space=smem, size = 0x4, offset = 0x4, fixed_abs, tag = 'smem constant byte address 0x4 - core index']
  #allocation1 [shape = 'u32[72,128]{1,0:T(1,128)}', space=vmem, size = 0x9000, scoped, tag = 'internal scratch']
  #allocation2 [shape = 'f32[16,16]{1,0:T(8,128)}', space=vmem, size = 0x2000, scoped, tag = 'scratch operand']
  %s0 = inlined_call_operand.vmem [shape: f32[16,32], index: 0, kind: input, shape index: {}]
  %s1 = inlined_call_operand.vmem [shape: f32[32,16], index: 1, kind: input, shape index: {}]
  %s2 = inlined_call_operand.hbm [shape: f32[16,16], index: 2, kind: output, shape index: {}]
  %s3 = sld [smem:[#allocation0]]
  $region26: #{tpu_custom_call.1} parent=0
    _
  %s5 = ssub.s32 1, %s3
  %s6 = scalar_select 0, %s5, %s3
  $region1: #{tpu_custom_call.1} parent=0
    #allocation3 [shape = 'u8[8192]{0}', space=vmem, size = 0x2000, scoped, tag = 'output window, operand 0, single buffered']
    #allocation4 [shape = 's32[1]{0}', space=sflag, size = 0x4, scoped, tag = 'scoped memory for tpu_custom_call.1']
    %7 = vsyncpa [#allocation4], 0
    // Predicated region
    $region2: #{tpu_custom_call.1} parent=1 // pred_check
      _
    $region3: #{tpu_custom_call.1} parent=1 // pred_check_branch
      %9 = sbr.rel (0) target = $region5
    $region4: #{tpu_custom_call.1} parent=1 // pred_region
      _
    $region5: #{tpu_custom_call.1} parent=1 // pred_fallthru
      _
    // Predicated region
    $region6: #{tpu_custom_call.1} parent=1 // pred_check
      _
    $region7: #{tpu_custom_call.1} parent=1 // pred_check_branch
      %11 = sbr.rel (0) target = $region9
    $region8: #{tpu_custom_call.1} parent=1 // pred_region
      _
    $region9: #{tpu_custom_call.1} parent=1 // pred_fallthru
      _
    %p12 = scmp.eq.s32.totalorder 0, 0
    // Predicated region
    $region10: #{tpu_custom_call.1} parent=1 // pred_check
      %p13 = pneg %p12
    $region11: #{tpu_custom_call.1} parent=1 // pred_check_branch
      %15 = sbr.rel (%p13) target = $region13
    $region12: #{tpu_custom_call.1} parent=1 // pred_region
      %vm16 = vcmask 130048
      %17 = vst.msk [vmem:[#allocation2] sm:$0xff] %vm16, 0.0
      %18 = vst.msk [vmem:[#allocation2 + $0x8] sm:$0xff] %vm16, 0.0
    $region13: #{tpu_custom_call.1} parent=1 // pred_fallthru
      _
    %v19 = vld [vmem:[%s0] sm:$0xff]
    %v20 = vld [vmem:[%s0 + $0x8] sm:$0xff]
    %v21 = vld [vmem:[#allocation2] sm:$0xff]
    %v22 = vld [vmem:[#allocation2 + $0x8] sm:$0xff]
    %v23 = vld [vmem:[%s1] sm:$0xff]
    %v24 = vld [vmem:[%s1 + $0x8] sm:$0xff]
    %v25 = vld [vmem:[%s1 + $0x10] sm:$0xff]
    %v26 = vld [vmem:[%s1 + $0x18] sm:$0xff]
    %vm27 = vcmask 261120
    %v29 = vsel %vm27, %v19, 0
    %v32 = vsel %vm27, %v20, 0
    %34 = vmatpush.msra.mxu0 0.0
    %35 = vmatpush.msra.mxu0 0.0
    %36 = vmatpush.msra.mxu0 0.0
    %37 = vmatpush.msra.mxu0 0.0
    %38 = vmatpush.msra.mxu0 0.0
    %39 = vmatpush.msra.mxu0 0.0
    %40 = vmatpush.msra.mxu0 0.0
    %41 = vmatpush.msra.mxu0 0.0
    %42 = vmatpush.msra.mxu0 0.0
    %43 = vmatpush.msra.mxu0 0.0
    %44 = vmatpush.msra.mxu0 0.0
    %45 = vmatpush.msra.mxu0 0.0
    %46 = vmatpush.msra.mxu0 %v26
    %47 = vmatpush.msra.mxu0 %v25
    %48 = vmatpush.msra.mxu0 %v24
    %49 = vmatpush.msra.mxu0 %v23
    %50 = vmatmul.f32.gmra.mxu0 %v29
    %v51 = vpop.f32.mrf.mxu0
    %v52 = vadd.f32 0.0, %v51
    %53 = vmatmul.f32.gmra.mxu0 %v32
    %v54 = vpop.f32.mrf.mxu0
    %v55 = vadd.f32 0.0, %v54
    %56 = vdwg.mxu0
    %v57 = vadd.f32 %v21, %v52
    %v58 = vadd.f32 %v22, %v55
    %vm59 = vcmask 130048
    %60 = vst.msk [vmem:[#allocation2] sm:$0xff] %vm59, %v57
    %61 = vst.msk [vmem:[#allocation2 + $0x8] sm:$0xff] %vm59, %v58
    // Predicated region
    $region14: #{tpu_custom_call.1} parent=1 // pred_check
      %p62 = pneg %p12
    $region15: #{tpu_custom_call.1} parent=1 // pred_check_branch
      %64 = sbr.rel (%p62) target = $region17
    $region16: #{tpu_custom_call.1} parent=1 // pred_region
      %v65 = vld [vmem:[#allocation2] sm:$0xff]
      %v66 = vld [vmem:[#allocation2 + $0x8] sm:$0xff]
      %67 = vst.msk [vmem:[#allocation3] sm:$0xff] %vm59, %v65
      %68 = vst.msk [vmem:[#allocation3 + $0x8] sm:$0xff] %vm59, %v66
    $region17: #{tpu_custom_call.1} parent=1 // pred_fallthru
      _
    // Predicated region
    $region18: #{tpu_custom_call.1} parent=1 // pred_check
      _
    $region19: #{tpu_custom_call.1} parent=1 // pred_check_branch
      %70 = sbr.rel (0) target = $region21
    $region20: #{tpu_custom_call.1} parent=1 // pred_region
      %72 = vsyncadd [#allocation4], 0
      %s73 = sshll.u32 [#allocation3], 4
      %s74 = int_to_ptr.vmem [resolvable:$true] %s73
      %s75 = sshll.u32 %s2, 4
      %s76 = int_to_ptr.hbm [resolvable:$true] %s75
      %81 = dma.vmem_to_hbm [thread:$0]  %s74, 256, %s76, [#allocation4], 128, 128, 8
    $region21: #{tpu_custom_call.1} parent=1 // pred_fallthru
      _
    // Predicated region
    $region22: #{tpu_custom_call.1} parent=1 // pred_check
      _
    $region23: #{tpu_custom_call.1} parent=1 // pred_check_branch
      %83 = sbr.rel (0) target = $region25
    $region24: #{tpu_custom_call.1} parent=1 // pred_region
      %85 = dma.done [#allocation4], 256
    $region25: #{tpu_custom_call.1} parent=1 // pred_fallthru
      _
    %86 = vsyncpa [#allocation4], 1

</llo_original>
